<compile_context>
chip_gen: v7x
topology: tpu7x:2x2x1
jax: 0.10.0
libtpu: 0.0.40
codegen_flags: <defaults>
</compile_context>

<pallas_src>
import functools

import jax
import jax.numpy as jnp
import numpy as np
from jax.experimental import pallas as pl
from jax.experimental.pallas import tpu as pltpu

LN_EPS = 1e-5  # torch.nn.LayerNorm default eps
_MiB = 1024 * 1024


def _round_up(n, m):
    return ((n + m - 1) // m) * m


def _vmem_budget_bytes():
    """Scoped-VMEM target: physical capacity minus headroom, bounded."""
    cap = 64 * _MiB  # conservative default (v7x per-TC VMEM) if query fails
    try:
        info = pltpu.get_tpu_info()
        c = getattr(info, "vmem_capacity_bytes", None)
        if c:
            cap = int(c)
    except Exception:
        pass
    # >=16 MiB headroom for compiler scratch / semaphores; never above 100 MiB.
    return max(32 * _MiB, min(cap - 16 * _MiB, 100 * _MiB))


def _layernorm_f32(x, gamma, beta):
    """Two-pass LayerNorm over the last dim, all math in f32."""
    mean = jnp.mean(x, axis=-1, keepdims=True)
    xc = x - mean
    var = jnp.mean(xc * xc, axis=-1, keepdims=True)
    return xc * jax.lax.rsqrt(var + LN_EPS) * gamma + beta


def adapter_kernel(*refs, scale, scale_mode, ln_mode, residual_mode, matmul_dtype):
    it = iter(refs)
    x_ref = next(it)
    gamma_ref = next(it)
    beta_ref = next(it)
    wd_ref = next(it)
    bd_ref = next(it)
    wu_ref = next(it)
    bu_ref = next(it)
    scale_ref = next(it) if scale_mode == "dynamic" else None
    res_ref = next(it) if residual_mode == "explicit" else None
    out_ref = next(it)

    x = x_ref[...].astype(jnp.float32)          # (tm, D)

    if ln_mode == "in":
        h = _layernorm_f32(x,
                           gamma_ref[...].astype(jnp.float32),
                           beta_ref[...].astype(jnp.float32))
    else:
        h = x

    # down projection on the MXU: (tm, D) @ (D, Dd_p), f32 accumulate.
    down = jnp.dot(h.astype(matmul_dtype), wd_ref[...],
                   preferred_element_type=jnp.float32)
    down = jnp.maximum(down + bd_ref[...], 0.0)  # bias + ReLU in f32
    # dropout(p=0.0) -> identity.
    # TODO(synk): dropout with p > 0 (training) not implemented; would need
    # pltpu.prng_seed / pltpu.prng_random_bits per tile.

    # up projection on the MXU: (tm, Dd_p) @ (Dd_p, D), f32 accumulate.
    up = jnp.dot(down.astype(matmul_dtype), wu_ref[...],
                 preferred_element_type=jnp.float32)
    up = up + bu_ref[...]
    if scale_mode == "dynamic":
        up = up * scale_ref[0]                  # learnable scalar from SMEM
    elif scale != 1.0:                          # static: skip no-op multiply
        up = up * scale

    if ln_mode == "out":
        up = _layernorm_f32(up,
                            gamma_ref[...].astype(jnp.float32),
                            beta_ref[...].astype(jnp.float32))

    if residual_mode == "x":                    # residual defaults to pre-LN x
        up = up + x
    elif residual_mode == "explicit":
        up = up + res_ref[...].astype(jnp.float32)

    out_ref[...] = up.astype(out_ref.dtype)


def prepare_adapter_params(params, *, matmul_dtype=jnp.bfloat16):
    """One-time weight prep (cast / lane-pad / reshape), hoisted off the forward path."""
    if isinstance(params, dict) and params.get("_prepared"):
        return params
    D, Dd = params["wd"].shape
    Dd_p = _round_up(Dd, 128)                   # lane-dense down dimension

    gamma = params.get("gamma")
    beta = params.get("beta")
    gamma = jnp.ones((D,), jnp.float32) if gamma is None else gamma
    beta = jnp.zeros((D,), jnp.float32) if beta is None else beta

    wd = params["wd"].astype(matmul_dtype)      # (D, Dd)
    wu = params["wu"].astype(matmul_dtype)      # (Dd, D)
    bd = params["bd"].astype(jnp.float32)
    if Dd_p != Dd:                              # exact: relu(0@Wd+0)=0 feeds zero rows of Wu
        wd = jnp.pad(wd, ((0, 0), (0, Dd_p - Dd)))
        wu = jnp.pad(wu, ((0, Dd_p - Dd), (0, 0)))
        bd = jnp.pad(bd, ((0, Dd_p - Dd),))

    return {
        "_prepared": True,
        "d_dim": int(D),
        "down_dim": int(Dd),
        "down_dim_padded": int(Dd_p),
        "matmul_dtype": matmul_dtype,
        "gamma": gamma.astype(jnp.float32).reshape(1, D),
        "beta": beta.astype(jnp.float32).reshape(1, D),
        "wd": wd,
        "bd": bd.reshape(1, Dd_p),
        "wu": wu,
        "bu": params["bu"].astype(jnp.float32).reshape(1, D),
    }


def adapter_forward(x, params, *, scale=1.0, add_residual=False, residual=None,
                    adapter_layernorm_option="in", tm=1024,
                    matmul_dtype=jnp.bfloat16):
    """x: [B, N, D].  params: raw dict (gamma/beta/wd/bd/wu/bu) or prepare_adapter_params output."""
    if adapter_layernorm_option not in ("in", "out", "none", None):
        raise ValueError(
            f"unsupported adapter_layernorm_option={adapter_layernorm_option!r}")
    ln_mode = (adapter_layernorm_option
               if adapter_layernorm_option in ("in", "out") else "none")

    prep = (params if isinstance(params, dict) and params.get("_prepared")
            else prepare_adapter_params(params, matmul_dtype=matmul_dtype))
    matmul_dtype = prep["matmul_dtype"]

    B, N, D = x.shape
    assert D == prep["d_dim"], "x feature dim does not match adapter params"
    rows = B * N
    Dd_p = prep["down_dim_padded"]

    x2 = x.reshape(rows, D)

    # Static (baked) vs learnable (traced) scale.
    if isinstance(scale, (int, float)):
        scale_mode, scale_val, scale_arr = "static", float(scale), None
    else:
        scale_mode, scale_val = "dynamic", 1.0
        scale_arr = jnp.asarray(scale, jnp.float32).reshape(1)

    if not add_residual:
        residual_mode, res2 = "none", None
    elif residual is None:
        residual_mode, res2 = "x", None         # add the pre-LN input, no extra DMA
    else:
        residual_mode = "explicit"
        res2 = residual.reshape(rows, D)

    # ---- tile-size selection from the VMEM budget -------------------------
    x_bytes = jnp.dtype(x.dtype).itemsize
    w_bytes = jnp.dtype(matmul_dtype).itemsize
    n_row_tiles = 2 + (1 if residual_mode == "explicit" else 0)  # x, out (+res)

    budget = _vmem_budget_bytes()
    # conservative (assume double-buffered weights even if single-buffering lands)
    weight_bytes = 2 * 2 * D * Dd_p * w_bytes + 8 * D * 4
    per_row = 2 * n_row_tiles * D * x_bytes + 2 * (2 * D + Dd_p) * 4
    avail = max(budget - weight_bytes, per_row * 8)
    tm = int(min(int(tm), max(8, (avail // per_row) // 8 * 8)))

    # Keep >= 2 balanced parallel grid steps when possible (v7x dual TCs).
    if rows > tm:
        tm = min(tm, _round_up(-(-rows // 2), 8))
    tm = _round_up(max(8, min(tm, _round_up(rows, 8))), 8)
    grid = (pl.cdiv(rows, tm),)                 # ragged tail = partial last block

    est = (2 * n_row_tiles * tm * D * x_bytes + weight_bytes
           + 2 * tm * (2 * D + Dd_p) * 4)
    vmem_limit = int(min(max(2 * est, 32 * _MiB), budget))

    kernel = functools.partial(
        adapter_kernel,
        scale=scale_val,
        scale_mode=scale_mode,
        ln_mode=ln_mode,
        residual_mode=residual_mode,
        matmul_dtype=matmul_dtype,
    )

    def _build_and_call(single_buffer_weights):
        const_kwargs = {}
        if single_buffer_weights and hasattr(pl, "Buffered"):
            const_kwargs = {"pipeline_mode": pl.Buffered(1)}

        def const_spec(shape):
            try:
                return pl.BlockSpec(shape, lambda i: (0, 0), **const_kwargs)
            except TypeError:                   # pipeline_mode kwarg unsupported
                return pl.BlockSpec(shape, lambda i: (0, 0))

        in_specs = [
            pl.BlockSpec((tm, D), lambda i: (i, 0)),     # x tile
            const_spec((1, D)),                          # gamma (resident)
            const_spec((1, D)),                          # beta
            const_spec((D, Dd_p)),                       # Wd (resident)
            const_spec((1, Dd_p)),                       # bd
            const_spec((Dd_p, D)),                       # Wu (resident)
            const_spec((1, D)),                          # bu
        ]
        operands = [x2, prep["gamma"], prep["beta"], prep["wd"], prep["bd"],
                    prep["wu"], prep["bu"]]
        if scale_mode == "dynamic":
            in_specs.append(pl.BlockSpec(memory_space=pltpu.MemorySpace.SMEM))
            operands.append(scale_arr)
        if residual_mode == "explicit":
            in_specs.append(pl.BlockSpec((tm, D), lambda i: (i, 0)))
            operands.append(res2)

        return pl.pallas_call(
            kernel,
            out_shape=jax.ShapeDtypeStruct((rows, D), x.dtype),
            grid_spec=pltpu.PrefetchScalarGridSpec(
                num_scalar_prefetch=0,
                grid=grid,
                in_specs=in_specs,
                out_specs=pl.BlockSpec((tm, D), lambda i: (i, 0)),
            ),
            compiler_params=pltpu.CompilerParams(
                dimension_semantics=("parallel",),
                vmem_limit_bytes=vmem_limit,
            ),
        )(*operands)

    try:
        out = _build_and_call(True)             # single-buffered resident weights
    except Exception:
        out = _build_and_call(False)            # fallback: default double-buffering

    return out.reshape(B, N, D)


def adapter_reference(x, params, *, scale=1.0, add_residual=False, residual=None,
                      adapter_layernorm_option="in"):
    """Pure-JAX f32 reference mirroring the PyTorch forward."""
    res = x if residual is None else residual
    h = x
    if adapter_layernorm_option == "in":
        mean = jnp.mean(h, axis=-1, keepdims=True)
        var = jnp.mean((h - mean) ** 2, axis=-1, keepdims=True)
        h = (h - mean) / jnp.sqrt(var + LN_EPS) * params["gamma"] + params["beta"]
    down = jnp.maximum(h @ params["wd"] + params["bd"], 0.0)
    up = (down @ params["wu"] + params["bu"]) * scale
    if adapter_layernorm_option == "out":
        mean = jnp.mean(up, axis=-1, keepdims=True)
        var = jnp.mean((up - mean) ** 2, axis=-1, keepdims=True)
        up = (up - mean) / jnp.sqrt(var + LN_EPS) * params["gamma"] + params["beta"]
    return up + res if add_residual else up


def init_params(key, d_dim, down_dim):
    # Shapes follow the PyTorch __init__ (Linear weights stored pre-transposed
    # for x @ W layout).  The module's 'lora' init zeroes the up projection
    # (output identically 0), so for a non-trivial numerical test we use small
    # deterministic random values instead; shapes are unchanged.
    k1, k2, k3, k4 = jax.random.split(key, 4)
    bound_d = float(np.sqrt(6.0 / d_dim) / np.sqrt(6.0))
    wd_t = jax.random.uniform(k1, (down_dim, d_dim), jnp.float32,
                              minval=-bound_d, maxval=bound_d)
    wu_t = jax.random.uniform(k2, (d_dim, down_dim), jnp.float32,
                              minval=-0.02, maxval=0.02)
    return {
        "gamma": jnp.ones((d_dim,), jnp.float32),
        "beta": jnp.zeros((d_dim,), jnp.float32),
        "wd": wd_t.T,                                   # (d_dim, down_dim)
        "bd": jax.random.normal(k3, (down_dim,), jnp.float32) * 0.01,
        "wu": wu_t.T,                                   # (down_dim, d_dim)
        "bu": jax.random.normal(k4, (d_dim,), jnp.float32) * 0.01,
    }


if __name__ == "__main__":
    key = jax.random.PRNGKey(0)
    kx, kp, kr = jax.random.split(key, 3)

    B, N, D, DOWN = 2, 8, 32, 16
    x = jax.random.normal(kx, (B, N, D), jnp.float32)
    raw_params = init_params(kp, D, DOWN)

    # One-time parameter prep (hoisted off the forward path).
    params_f32 = prepare_adapter_params(raw_params, matmul_dtype=jnp.float32)
    params_bf16 = prepare_adapter_params(raw_params, matmul_dtype=jnp.bfloat16)

    # 1) exact path (f32 matmul operands), LN 'in', no residual -- tight check.
    out = jax.block_until_ready(adapter_forward(
        x, params_f32, scale=1.0, add_residual=False,
        adapter_layernorm_option="in"))
    ref = adapter_reference(x, raw_params, scale=1.0, add_residual=False,
                            adapter_layernorm_option="in")
    np.testing.assert_allclose(np.asarray(out), np.asarray(ref),
                               rtol=1e-4, atol=2e-5)

    # 2) perf path: bf16 MXU operands, ragged row count (14 rows -> partial
    #    trailing block handled inside the pipeline, no wrapper pad/slice),
    #    default residual (= pre-LN input) -- loose check vs f32 reference.
    x_odd = jax.random.normal(kr, (2, 7, D), jnp.float32)
    out_bf = jax.block_until_ready(adapter_forward(
        x_odd, params_bf16, scale=1.0, add_residual=True,
        adapter_layernorm_option="in"))
    ref_bf = adapter_reference(x_odd, raw_params, scale=1.0, add_residual=True,
                               adapter_layernorm_option="in")
    np.testing.assert_allclose(np.asarray(out_bf), np.asarray(ref_bf),
                               rtol=5e-2, atol=5e-2)

    # 3) 'out' LayerNorm + explicit residual + LEARNABLE (traced array) scale
    #    (exact f32 path) -- exercises the dynamic-scale SMEM operand.
    res = jax.random.normal(jax.random.PRNGKey(7), (B, N, D), jnp.float32)
    learnable_scale = jnp.asarray([0.5], jnp.float32)
    out3 = jax.block_until_ready(adapter_forward(
        x, params_f32, scale=learnable_scale, add_residual=True, residual=res,
        adapter_layernorm_option="out"))
    ref3 = adapter_reference(x, raw_params, scale=0.5, add_residual=True,
                             residual=res, adapter_layernorm_option="out")
    np.testing.assert_allclose(np.asarray(out3), np.asarray(ref3),
                               rtol=1e-4, atol=2e-5)

    print("KERNEL_OK")
</pallas_src>

<mosaic_0001>
module attributes {stable_mosaic.version = 11 : i64} {
  func.func @adapter_kernel(%arg0: i32, %arg1: memref<16x32xf32, #tpu.memory_space<vmem>>, %arg2: memref<1x32xf32, #tpu.memory_space<vmem>>, %arg3: memref<1x32xf32, #tpu.memory_space<vmem>>, %arg4: memref<32x128xf32, #tpu.memory_space<vmem>>, %arg5: memref<1x128xf32, #tpu.memory_space<vmem>>, %arg6: memref<128x32xf32, #tpu.memory_space<vmem>>, %arg7: memref<1x32xf32, #tpu.memory_space<vmem>>, %arg8: memref<16x32xf32, #tpu.memory_space<vmem>>) attributes {dimension_semantics = [#tpu.dimension_semantics<parallel>], iteration_bounds = array<i64: 1>, scalar_prefetch = 0 : i64, scratch_operands = 0 : i64, tpu.core_type = #tpu.core_type<tc>, window_params = [{transform_indices = @transform_0, window_bounds = array<i64: 16, 32>}, {pipeline_mode = #tpu.pipeline_mode<synchronous>, transform_indices = @transform_1, window_bounds = array<i64: 1, 32>}, {pipeline_mode = #tpu.pipeline_mode<synchronous>, transform_indices = @transform_2, window_bounds = array<i64: 1, 32>}, {pipeline_mode = #tpu.pipeline_mode<synchronous>, transform_indices = @transform_3, window_bounds = array<i64: 32, 128>}, {pipeline_mode = #tpu.pipeline_mode<synchronous>, transform_indices = @transform_4, window_bounds = array<i64: 1, 128>}, {pipeline_mode = #tpu.pipeline_mode<synchronous>, transform_indices = @transform_5, window_bounds = array<i64: 128, 32>}, {pipeline_mode = #tpu.pipeline_mode<synchronous>, transform_indices = @transform_6, window_bounds = array<i64: 1, 32>}, {transform_indices = @transform_7, window_bounds = array<i64: 16, 32>}]} {
    %c0 = arith.constant 0 : index
    %c0_0 = arith.constant 0 : index
    %0 = vector.load %arg1[%c0, %c0_0] : memref<16x32xf32, #tpu.memory_space<vmem>>, vector<16x32xf32>
    %c0_1 = arith.constant 0 : index
    %c0_2 = arith.constant 0 : index
    %1 = vector.load %arg2[%c0_1, %c0_2] : memref<1x32xf32, #tpu.memory_space<vmem>>, vector<1x32xf32>
    %c0_3 = arith.constant 0 : index
    %c0_4 = arith.constant 0 : index
    %2 = vector.load %arg3[%c0_3, %c0_4] : memref<1x32xf32, #tpu.memory_space<vmem>>, vector<1x32xf32>
    %cst = arith.constant dense<0.000000e+00> : vector<16xf32>
    %3 = vector.multi_reduction <add>, %0, %cst [1] : vector<16x32xf32> to vector<16xf32>
    %4 = vector.shape_cast %3 : vector<16xf32> to vector<16x1xf32>
    %cst_5 = arith.constant 3.200000e+01 : f32
    %5 = vector.broadcast %cst_5 : f32 to vector<16x1xf32>
    %6 = arith.divf %4, %5 : vector<16x1xf32>
    %7 = vector.broadcast %6 : vector<16x1xf32> to vector<16x32xf32>
    %8 = arith.subf %0, %7 : vector<16x32xf32>
    %9 = arith.mulf %8, %8 : vector<16x32xf32>
    %cst_6 = arith.constant dense<0.000000e+00> : vector<16xf32>
    %10 = vector.multi_reduction <add>, %9, %cst_6 [1] : vector<16x32xf32> to vector<16xf32>
    %11 = vector.shape_cast %10 : vector<16xf32> to vector<16x1xf32>
    %cst_7 = arith.constant 3.200000e+01 : f32
    %12 = vector.broadcast %cst_7 : f32 to vector<16x1xf32>
    %13 = arith.divf %11, %12 : vector<16x1xf32>
    %cst_8 = arith.constant 9.99999974E-6 : f32
    %14 = vector.broadcast %cst_8 : f32 to vector<16x1xf32>
    %15 = arith.addf %13, %14 : vector<16x1xf32>
    %16 = math.rsqrt %15 : vector<16x1xf32>
    %17 = vector.broadcast %16 : vector<16x1xf32> to vector<16x32xf32>
    %18 = arith.mulf %8, %17 : vector<16x32xf32>
    %19 = vector.broadcast %1 : vector<1x32xf32> to vector<16x32xf32>
    %20 = arith.mulf %18, %19 : vector<16x32xf32>
    %21 = vector.broadcast %2 : vector<1x32xf32> to vector<16x32xf32>
    %22 = arith.addf %20, %21 : vector<16x32xf32>
    %c0_9 = arith.constant 0 : index
    %c0_10 = arith.constant 0 : index
    %23 = vector.load %arg4[%c0_9, %c0_10] : memref<32x128xf32, #tpu.memory_space<vmem>>, vector<32x128xf32>
    %cst_11 = arith.constant dense<0.000000e+00> : vector<16x128xf32>
    %24 = tpu.matmul %22, %23, %cst_11 {dimension_numbers = #tpu.dot_dimension_numbers<[1], [0], [0], [1], [0, 0, 1, 1], [], []>} : vector<16x32xf32>, vector<32x128xf32>, vector<16x128xf32> -> vector<16x128xf32>
    %c0_12 = arith.constant 0 : index
    %c0_13 = arith.constant 0 : index
    %25 = vector.load %arg5[%c0_12, %c0_13] : memref<1x128xf32, #tpu.memory_space<vmem>>, vector<1x128xf32>
    %26 = vector.broadcast %25 : vector<1x128xf32> to vector<16x128xf32>
    %27 = arith.addf %24, %26 : vector<16x128xf32>
    %cst_14 = arith.constant 0.000000e+00 : f32
    %28 = vector.broadcast %cst_14 : f32 to vector<16x128xf32>
    %29 = arith.maximumf %27, %28 : vector<16x128xf32>
    %c0_15 = arith.constant 0 : index
    %c0_16 = arith.constant 0 : index
    %30 = vector.load %arg6[%c0_15, %c0_16] : memref<128x32xf32, #tpu.memory_space<vmem>>, vector<128x32xf32>
    %cst_17 = arith.constant dense<0.000000e+00> : vector<16x32xf32>
    %31 = tpu.matmul %29, %30, %cst_17 {dimension_numbers = #tpu.dot_dimension_numbers<[1], [0], [0], [1], [0, 0, 1, 1], [], []>} : vector<16x128xf32>, vector<128x32xf32>, vector<16x32xf32> -> vector<16x32xf32>
    %c0_18 = arith.constant 0 : index
    %c0_19 = arith.constant 0 : index
    %32 = vector.load %arg7[%c0_18, %c0_19] : memref<1x32xf32, #tpu.memory_space<vmem>>, vector<1x32xf32>
    %33 = vector.broadcast %32 : vector<1x32xf32> to vector<16x32xf32>
    %34 = arith.addf %31, %33 : vector<16x32xf32>
    %c0_20 = arith.constant 0 : index
    %c0_21 = arith.constant 0 : index
    %35 = vector.load %arg8[%c0_20, %c0_21] : memref<16x32xf32, #tpu.memory_space<vmem>>, vector<16x32xf32>
    tpu.vector_store %arg8[%c0_20, %c0_21], %34 {strides = array<i32>} : memref<16x32xf32, #tpu.memory_space<vmem>>, vector<16x32xf32>,
    return
  }
  func.func @transform_0(%arg0: i32) -> (i32, i32) {
    %c0_i32 = arith.constant 0 : i32
    %c0_i32_0 = arith.constant 0 : i32
    return %arg0, %c0_i32 : i32, i32
  }
  func.func @transform_1(%arg0: i32) -> (i32, i32) {
    %c0_i32 = arith.constant 0 : i32
    %c0_i32_0 = arith.constant 0 : i32
    %c0_i32_1 = arith.constant 0 : i32
    return %c0_i32, %c0_i32_0 : i32, i32
  }
  func.func @transform_2(%arg0: i32) -> (i32, i32) {
    %c0_i32 = arith.constant 0 : i32
    %c0_i32_0 = arith.constant 0 : i32
    %c0_i32_1 = arith.constant 0 : i32
    return %c0_i32, %c0_i32_0 : i32, i32
  }
  func.func @transform_3(%arg0: i32) -> (i32, i32) {
    %c0_i32 = arith.constant 0 : i32
    %c0_i32_0 = arith.constant 0 : i32
    %c0_i32_1 = arith.constant 0 : i32
    return %c0_i32, %c0_i32_0 : i32, i32
  }
  func.func @transform_4(%arg0: i32) -> (i32, i32) {
    %c0_i32 = arith.constant 0 : i32
    %c0_i32_0 = arith.constant 0 : i32
    %c0_i32_1 = arith.constant 0 : i32
    return %c0_i32, %c0_i32_0 : i32, i32
  }
  func.func @transform_5(%arg0: i32) -> (i32, i32) {
    %c0_i32 = arith.constant 0 : i32
    %c0_i32_0 = arith.constant 0 : i32
    %c0_i32_1 = arith.constant 0 : i32
    return %c0_i32, %c0_i32_0 : i32, i32
  }
  func.func @transform_6(%arg0: i32) -> (i32, i32) {
    %c0_i32 = arith.constant 0 : i32
    %c0_i32_0 = arith.constant 0 : i32
    %c0_i32_1 = arith.constant 0 : i32
    return %c0_i32, %c0_i32_0 : i32, i32
  }
  func.func @transform_7(%arg0: i32) -> (i32, i32) {
    %c0_i32 = arith.constant 0 : i32
    %c0_i32_0 = arith.constant 0 : i32
    return %arg0, %c0_i32 : i32, i32
  }
}

module attributes {stable_mosaic.version = 11 : i64} {
  func.func @adapter_kernel(%arg0: i32, %arg1: memref<16x32xf32, #tpu.memory_space<vmem>>, %arg2: memref<1x32xf32, #tpu.memory_space<vmem>>, %arg3: memref<1x32xf32, #tpu.memory_space<vmem>>, %arg4: memref<32x128xf32, #tpu.memory_space<vmem>>, %arg5: memref<1x128xf32, #tpu.memory_space<vmem>>, %arg6: memref<128x32xf32, #tpu.memory_space<vmem>>, %arg7: memref<1x32xf32, #tpu.memory_space<vmem>>, %arg8: memref<16x32xf32, #tpu.memory_space<vmem>>) attributes {dimension_semantics = [#tpu.dimension_semantics<parallel>], iteration_bounds = array<i64: 1>, scalar_prefetch = 0 : i64, scratch_operands = 0 : i64, tpu.core_type = #tpu.core_type<tc>, window_params = [{transform_indices = @transform_0, window_bounds = array<i64: 16, 32>}, {pipeline_mode = #tpu.pipeline_mode<synchronous>, transform_indices = @transform_1, window_bounds = array<i64: 1, 32>}, {pipeline_mode = #tpu.pipeline_mode<synchronous>, transform_indices = @transform_2, window_bounds = array<i64: 1, 32>}, {pipeline_mode = #tpu.pipeline_mode<synchronous>, transform_indices = @transform_3, window_bounds = array<i64: 32, 128>}, {pipeline_mode = #tpu.pipeline_mode<synchronous>, transform_indices = @transform_4, window_bounds = array<i64: 1, 128>}, {pipeline_mode = #tpu.pipeline_mode<synchronous>, transform_indices = @transform_5, window_bounds = array<i64: 128, 32>}, {pipeline_mode = #tpu.pipeline_mode<synchronous>, transform_indices = @transform_6, window_bounds = array<i64: 1, 32>}, {transform_indices = @transform_7, window_bounds = array<i64: 16, 32>}]} {
    %c0 = arith.constant 0 : index
    %c0_0 = arith.constant 0 : index
    %0 = vector.load %arg1[%c0, %c0_0] : memref<16x32xf32, #tpu.memory_space<vmem>>, vector<16x32xf32>
    %c0_1 = arith.constant 0 : index
    %c0_2 = arith.constant 0 : index
    %1 = vector.load %arg2[%c0_1, %c0_2] : memref<1x32xf32, #tpu.memory_space<vmem>>, vector<1x32xf32>
    %c0_3 = arith.constant 0 : index
    %c0_4 = arith.constant 0 : index
    %2 = vector.load %arg3[%c0_3, %c0_4] : memref<1x32xf32, #tpu.memory_space<vmem>>, vector<1x32xf32>
    %cst = arith.constant dense<0.000000e+00> : vector<16xf32>
    %3 = vector.multi_reduction <add>, %0, %cst [1] : vector<16x32xf32> to vector<16xf32>
    %4 = vector.shape_cast %3 : vector<16xf32> to vector<16x1xf32>
    %cst_5 = arith.constant 3.200000e+01 : f32
    %5 = vector.broadcast %cst_5 : f32 to vector<16x1xf32>
    %6 = arith.divf %4, %5 : vector<16x1xf32>
    %7 = vector.broadcast %6 : vector<16x1xf32> to vector<16x32xf32>
    %8 = arith.subf %0, %7 : vector<16x32xf32>
    %9 = arith.mulf %8, %8 : vector<16x32xf32>
    %cst_6 = arith.constant dense<0.000000e+00> : vector<16xf32>
    %10 = vector.multi_reduction <add>, %9, %cst_6 [1] : vector<16x32xf32> to vector<16xf32>
    %11 = vector.shape_cast %10 : vector<16xf32> to vector<16x1xf32>
    %cst_7 = arith.constant 3.200000e+01 : f32
    %12 = vector.broadcast %cst_7 : f32 to vector<16x1xf32>
    %13 = arith.divf %11, %12 : vector<16x1xf32>
    %cst_8 = arith.constant 9.99999974E-6 : f32
    %14 = vector.broadcast %cst_8 : f32 to vector<16x1xf32>
    %15 = arith.addf %13, %14 : vector<16x1xf32>
    %16 = math.rsqrt %15 : vector<16x1xf32>
    %17 = vector.broadcast %16 : vector<16x1xf32> to vector<16x32xf32>
    %18 = arith.mulf %8, %17 : vector<16x32xf32>
    %19 = vector.broadcast %1 : vector<1x32xf32> to vector<16x32xf32>
    %20 = arith.mulf %18, %19 : vector<16x32xf32>
    %21 = vector.broadcast %2 : vector<1x32xf32> to vector<16x32xf32>
    %22 = arith.addf %20, %21 : vector<16x32xf32>
    %c0_9 = arith.constant 0 : index
    %c0_10 = arith.constant 0 : index
    %23 = vector.load %arg4[%c0_9, %c0_10] : memref<32x128xf32, #tpu.memory_space<vmem>>, vector<32x128xf32>
    %cst_11 = arith.constant dense<0.000000e+00> : vector<16x128xf32>
    %24 = tpu.matmul %22, %23, %cst_11 {dimension_numbers = #tpu.dot_dimension_numbers<[1], [0], [0], [1], [0, 0, 1, 1], [], []>} : vector<16x32xf32>, vector<32x128xf32>, vector<16x128xf32> -> vector<16x128xf32>
    %c0_12 = arith.constant 0 : index
    %c0_13 = arith.constant 0 : index
    %25 = vector.load %arg5[%c0_12, %c0_13] : memref<1x128xf32, #tpu.memory_space<vmem>>, vector<1x128xf32>
    %26 = vector.broadcast %25 : vector<1x128xf32> to vector<16x128xf32>
    %27 = arith.addf %24, %26 : vector<16x128xf32>
    %cst_14 = arith.constant 0.000000e+00 : f32
    %28 = vector.broadcast %cst_14 : f32 to vector<16x128xf32>
    %29 = arith.maximumf %27, %28 : vector<16x128xf32>
    %c0_15 = arith.constant 0 : index
    %c0_16 = arith.constant 0 : index
    %30 = vector.load %arg6[%c0_15, %c0_16] : memref<128x32xf32, #tpu.memory_space<vmem>>, vector<128x32xf32>
    %cst_17 = arith.constant dense<0.000000e+00> : vector<16x32xf32>
    %31 = tpu.matmul %29, %30, %cst_17 {dimension_numbers = #tpu.dot_dimension_numbers<[1], [0], [0], [1], [0, 0, 1, 1], [], []>} : vector<16x128xf32>, vector<128x32xf32>, vector<16x32xf32> -> vector<16x32xf32>
    %c0_18 = arith.constant 0 : index
    %c0_19 = arith.constant 0 : index
    %32 = vector.load %arg7[%c0_18, %c0_19] : memref<1x32xf32, #tpu.memory_space<vmem>>, vector<1x32xf32>
    %33 = vector.broadcast %32 : vector<1x32xf32> to vector<16x32xf32>
    %34 = arith.addf %31, %33 : vector<16x32xf32>
    %c0_20 = arith.constant 0 : index
    %c0_21 = arith.constant 0 : index
    %35 = vector.load %arg8[%c0_20, %c0_21] : memref<16x32xf32, #tpu.memory_space<vmem>>, vector<16x32xf32>
    tpu.vector_store %arg8[%c0_20, %c0_21], %34 {strides = array<i32>} : memref<16x32xf32, #tpu.memory_space<vmem>>, vector<16x32xf32>,
    return
  }
  func.func @transform_0(%arg0: i32) -> (i32, i32) {
    %c0_i32 = arith.constant 0 : i32
    %c0_i32_0 = arith.constant 0 : i32
    return %arg0, %c0_i32 : i32, i32
  }
  func.func @transform_1(%arg0: i32) -> (i32, i32) {
    %c0_i32 = arith.constant 0 : i32
    %c0_i32_0 = arith.constant 0 : i32
    %c0_i32_1 = arith.constant 0 : i32
    return %c0_i32, %c0_i32_0 : i32, i32
  }
  func.func @transform_2(%arg0: i32) -> (i32, i32) {
    %c0_i32 = arith.constant 0 : i32
    %c0_i32_0 = arith.constant 0 : i32
    %c0_i32_1 = arith.constant 0 : i32
    return %c0_i32, %c0_i32_0 : i32, i32
  }
  func.func @transform_3(%arg0: i32) -> (i32, i32) {
    %c0_i32 = arith.constant 0 : i32
    %c0_i32_0 = arith.constant 0 : i32
    %c0_i32_1 = arith.constant 0 : i32
    return %c0_i32, %c0_i32_0 : i32, i32
  }
  func.func @transform_4(%arg0: i32) -> (i32, i32) {
    %c0_i32 = arith.constant 0 : i32
    %c0_i32_0 = arith.constant 0 : i32
    %c0_i32_1 = arith.constant 0 : i32
    return %c0_i32, %c0_i32_0 : i32, i32
  }
  func.func @transform_5(%arg0: i32) -> (i32, i32) {
    %c0_i32 = arith.constant 0 : i32
    %c0_i32_0 = arith.constant 0 : i32
    %c0_i32_1 = arith.constant 0 : i32
    return %c0_i32, %c0_i32_0 : i32, i32
  }
  func.func @transform_6(%arg0: i32) -> (i32, i32) {
    %c0_i32 = arith.constant 0 : i32
    %c0_i32_0 = arith.constant 0 : i32
    %c0_i32_1 = arith.constant 0 : i32
    return %c0_i32, %c0_i32_0 : i32, i32
  }
  func.func @transform_7(%arg0: i32) -> (i32, i32) {
    %c0_i32 = arith.constant 0 : i32
    %c0_i32_0 = arith.constant 0 : i32
    return %arg0, %c0_i32 : i32, i32
  }
}

</mosaic_0001>

<llo_original>
// kernel: tpu_custom_call.1
$region0: #{tpu_custom_call.1}
  #allocation0 [shape = 'u32[]', space=smem, size = 0x4, offset = 0x4, fixed_abs, tag = 'smem constant byte address 0x4 - core index']
  #allocation1 [shape = 'u32[144,128]{1,0:T(1,128)}', space=vmem, size = 0x12000, scoped, tag = 'internal scratch']
  %s0 = inlined_call_operand.vmem [shape: f32[16,32], index: 0, kind: input, shape index: {}]
  %s1 = inlined_call_operand.vmem [shape: f32[1,32], index: 1, kind: input, shape index: {}]
  %s2 = inlined_call_operand.vmem [shape: f32[1,32], index: 2, kind: input, shape index: {}]
  %s3 = inlined_call_operand.vmem [shape: f32[32,128], index: 3, kind: input, shape index: {}]
  %s4 = inlined_call_operand.vmem [shape: f32[1,128], index: 4, kind: input, shape index: {}]
  %s5 = inlined_call_operand.vmem [shape: f32[128,32], index: 5, kind: input, shape index: {}]
  %s6 = inlined_call_operand.vmem [shape: f32[1,32], index: 6, kind: input, shape index: {}]
  %s7 = inlined_call_operand.hbm [shape: f32[16,32], index: 7, kind: output, shape index: {}]
  %s8 = sld [smem:[#allocation0]]
  $region38: #{tpu_custom_call.1} parent=0
    _
  %s10 = ssub.s32 1, %s8
  %s11 = scalar_select 0, %s10, %s8
  $region1: #{tpu_custom_call.1} parent=0
    #allocation2 [shape = 'u8[8192]{0}', space=vmem, size = 0x2000, scoped, tag = 'output window, operand 0, single buffered']
    #allocation3 [shape = 's32[1]{0}', space=sflag, size = 0x4, scoped, tag = 'scoped memory for tpu_custom_call.1']
    %12 = vsyncpa [#allocation3], 0
    // Predicated region
    $region2: #{tpu_custom_call.1} parent=1 // pred_check
      _
    $region3: #{tpu_custom_call.1} parent=1 // pred_check_branch
      %14 = sbr.rel (0) target = $region5
    $region4: #{tpu_custom_call.1} parent=1 // pred_region
      _
    $region5: #{tpu_custom_call.1} parent=1 // pred_fallthru
      _
    // Predicated region
    $region6: #{tpu_custom_call.1} parent=1 // pred_check
      _
    $region7: #{tpu_custom_call.1} parent=1 // pred_check_branch
      %16 = sbr.rel (0) target = $region9
    $region8: #{tpu_custom_call.1} parent=1 // pred_region
      _
    $region9: #{tpu_custom_call.1} parent=1 // pred_fallthru
      _
    // Predicated region
    $region10: #{tpu_custom_call.1} parent=1 // pred_check
      _
    $region11: #{tpu_custom_call.1} parent=1 // pred_check_branch
      %18 = sbr.rel (0) target = $region13
    $region12: #{tpu_custom_call.1} parent=1 // pred_region
      _
    $region13: #{tpu_custom_call.1} parent=1 // pred_fallthru
      _
    // Predicated region
    $region14: #{tpu_custom_call.1} parent=1 // pred_check
      _
    $region15: #{tpu_custom_call.1} parent=1 // pred_check_branch
      %20 = sbr.rel (0) target = $region17
    $region16: #{tpu_custom_call.1} parent=1 // pred_region
      _
    $region17: #{tpu_custom_call.1} parent=1 // pred_fallthru
      _
    // Predicated region
    $region18: #{tpu_custom_call.1} parent=1 // pred_check
      _
    $region19: #{tpu_custom_call.1} parent=1 // pred_check_branch
      %22 = sbr.rel (0) target = $region21
    $region20: #{tpu_custom_call.1} parent=1 // pred_region
      _
    $region21: #{tpu_custom_call.1} parent=1 // pred_fallthru
      _
    // Predicated region
    $region22: #{tpu_custom_call.1} parent=1 // pred_check
      _
    $region23: #{tpu_custom_call.1} parent=1 // pred_check_branch
      %24 = sbr.rel (0) target = $region25
    $region24: #{tpu_custom_call.1} parent=1 // pred_region
      _
    $region25: #{tpu_custom_call.1} parent=1 // pred_fallthru
      _
    // Predicated region
    $region26: #{tpu_custom_call.1} parent=1 // pred_check
      _
    $region27: #{tpu_custom_call.1} parent=1 // pred_check_branch
      %26 = sbr.rel (0) target = $region29
    $region28: #{tpu_custom_call.1} parent=1 // pred_region
      _
    $region29: #{tpu_custom_call.1} parent=1 // pred_fallthru
      _
    %v27 = vld [vmem:[%s0] sm:$0xff]
    %v28 = vld [vmem:[%s0 + $0x8] sm:$0xff]
    %v29 = vld [vmem:[%s1] sm:$0x1]
    %v30 = vld [vmem:[%s2] sm:$0x1]
    %vm31 = vcmask 261120
    %v32 = vsel %vm31, %v27, 0.0
    %33 = vadd.xlane.f32.xlu0 %v32
    %v34 = vpop.xlane.xlu0 %33
    %v35 = vsel %vm31, %v28, 0.0
    %36 = vadd.xlane.f32.xlu0 %v35
    %v37 = vpop.xlane.xlu0 %36
    %v38 = vrcp.pop 32.0
    %v39 = vmul.f32 %v34, %v38
    %v40 = vmul.f32 %v37, %v38
    %v41 = vsub.f32 %v27, %v39
    %v42 = vsub.f32 %v28, %v40
    %v43 = vmul.f32 %v41, %v41
    %v44 = vmul.f32 %v42, %v42
    %v45 = vsel %vm31, %v43, 0.0
    %46 = vadd.xlane.f32.xlu0 %v45
    %v47 = vpop.xlane.xlu0 %46
    %v48 = vsel %vm31, %v44, 0.0
    %49 = vadd.xlane.f32.xlu0 %v48
    %v50 = vpop.xlane.xlu0 %49
    %v51 = vmul.f32 %v47, %v38
    %v52 = vmul.f32 %v50, %v38
    %v53 = vadd.f32 %v51, 1e-05
    %v54 = vadd.f32 %v52, 1e-05
    %v55 = vrsqrt.pop %v53
    %v56 = vrsqrt.pop %v54
    %v57 = vmul.f32 %v41, %v55
    %v58 = vmul.f32 %v42, %v56
    %v60 = vlaneseq
    %v61 = vshrl.u32 %v60, 7
    %v62 = vsub.s32 0, %v61
    %v63 = vrot.slane %v29, %v62
    %v65 = vmul.f32 %v57, %v63
    %v66 = vmul.f32 %v58, %v63
    %v68 = vlaneseq
    %v69 = vshrl.u32 %v68, 7
    %v70 = vsub.s32 0, %v69
    %v71 = vrot.slane %v30, %v70
    %v73 = vadd.f32 %v65, %v71
    %v74 = vadd.f32 %v66, %v71
    %v75 = vld [vmem:[%s3] sm:$0xff]
    %v76 = vld [vmem:[%s3 + $0x8] sm:$0xff]
    %v77 = vld [vmem:[%s3 + $0x10] sm:$0xff]
    %v78 = vld [vmem:[%s3 + $0x18] sm:$0xff]
    %v79 = vld [vmem:[%s4] sm:$0x1]
    %v81 = vlaneseq
    %v82 = vshrl.u32 %v81, 7
    %v83 = vsub.s32 0, %v82
    %v84 = vrot.slane %v79, %v83
    %v87 = vsel %vm31, %v73, 0
    %v90 = vsel %vm31, %v74, 0
    %92 = vmatprep.subr.mxu0 0.0
    %93 = vmatpush1.msra.mxu0 %v75
    %94 = vmatprep.subr.mxu0 0.0
    %95 = vmatpush1.msra.mxu0 %v76
    %96 = vmatprep.subr.mxu0 0.0
    %97 = vmatpush1.msra.mxu0 %v77
    %98 = vmatprep.subr.mxu0 0.0
    %99 = vmatpush1.msra.mxu0 %v78
    %100 = vmatprep.subr.mxu0 0.0
    %101 = vmatpush1.msra.mxu0 0.0
    %102 = vmatprep.subr.mxu0 0.0
    %103 = vmatpush1.msra.mxu0 0.0
    %104 = vmatprep.subr.mxu0 0.0
    %105 = vmatpush1.msra.mxu0 0.0
    %106 = vmatprep.subr.mxu0 0.0
    %107 = vmatpush1.msra.mxu0 0.0
    %108 = vmatprep.subr.mxu0 0.0
    %109 = vmatpush1.msra.mxu0 0.0
    %110 = vmatprep.subr.mxu0 0.0
    %111 = vmatpush1.msra.mxu0 0.0
    %112 = vmatprep.subr.mxu0 0.0
    %113 = vmatpush1.msra.mxu0 0.0
    %114 = vmatprep.subr.mxu0 0.0
    %115 = vmatpush1.msra.mxu0 0.0
    %116 = vmatprep.subr.mxu0 0.0
    %117 = vmatpush1.msra.mxu0 0.0
    %118 = vmatprep.subr.mxu0 0.0
    %119 = vmatpush1.msra.mxu0 0.0
    %120 = vmatprep.subr.mxu0 0.0
    %121 = vmatpush1.msra.mxu0 0.0
    %122 = vmatprep.subr.mxu0 0.0
    %123 = vmatpush1.msra.mxu0 0.0
    %124 = vmatprep.subr.mxu0 0.0
    %125 = vmatpush1.msra.mxu0 0.0
    %126 = vmatprep.subr.mxu0 0.0
    %127 = vmatpush1.msra.mxu0 0.0
    %128 = vmatprep.subr.mxu0 0.0
    %129 = vmatpush1.msra.mxu0 0.0
    %130 = vmatprep.subr.mxu0 0.0
    %131 = vmatpush1.msra.mxu0 0.0
    %132 = vmatprep.subr.mxu0 0.0
    %133 = vmatpush1.msra.mxu0 0.0
    %134 = vmatprep.subr.mxu0 0.0
    %135 = vmatpush1.msra.mxu0 0.0
    %136 = vmatprep.subr.mxu0 0.0
    %137 = vmatpush1.msra.mxu0 0.0
    %138 = vmatprep.subr.mxu0 0.0
    %139 = vmatpush1.msra.mxu0 0.0
    %140 = vmatprep.subr.mxu0 0.0
    %141 = vmatpush1.msra.mxu0 0.0
    %142 = vmatprep.subr.mxu0 0.0
    %143 = vmatpush1.msra.mxu0 0.0
    %144 = vmatprep.subr.mxu0 0.0
    %145 = vmatpush1.msra.mxu0 0.0
    %146 = vmatprep.subr.mxu0 0.0
    %147 = vmatpush1.msra.mxu0 0.0
    %148 = vmatprep.subr.mxu0 0.0
    %149 = vmatpush1.msra.mxu0 0.0
    %150 = vmatprep.subr.mxu0 0.0
    %151 = vmatpush1.msra.mxu0 0.0
    %152 = vmatprep.subr.mxu0 0.0
    %153 = vmatpush1.msra.mxu0 0.0
    %154 = vmatprep.subr.mxu0 0.0
    %155 = vmatpush1.msra.mxu0 0.0
    %156 = vmatprep.mubr.f32.mxu0 0.0
    %157 = vmatmul.mubr.f32.gmra.mrb[0].mxu0 %v87
    %v158 = vpop.f32.mrb[0].mxu0
    %v159 = vadd.f32 %v84, %v158
    %v160 = vpop.f32.mrb[0].mxu0
    %161 = vmatprep.mubr.f32.mxu0 0.0
    %162 = vmatmul.mubr.f32.gmra.mrb[0].mxu0 %v90
    %v163 = vpop.f32.mrb[0].mxu0
    %v164 = vadd.f32 %v84, %v163
    %v165 = vpop.f32.mrb[0].mxu0
    %166 = vdwg.mxu0
    %v167 = vmax.f32 %v159, 0.0
    %v168 = vmax.f32 %v164, 0.0
    %v169 = vld [vmem:[%s5] sm:$0xff]
    %v170 = vld [vmem:[%s5 + $0x8] sm:$0xff]
    %v171 = vld [vmem:[%s5 + $0x10] sm:$0xff]
    %v172 = vld [vmem:[%s5 + $0x18] sm:$0xff]
    %v173 = vld [vmem:[%s5 + $0x20] sm:$0xff]
    %v174 = vld [vmem:[%s5 + $0x28] sm:$0xff]
    %v175 = vld [vmem:[%s5 + $0x30] sm:$0xff]
    %v176 = vld [vmem:[%s5 + $0x38] sm:$0xff]
    %v177 = vld [vmem:[%s5 + $0x40] sm:$0xff]
    %v178 = vld [vmem:[%s5 + $0x48] sm:$0xff]
    %v179 = vld [vmem:[%s5 + $0x50] sm:$0xff]
    %v180 = vld [vmem:[%s5 + $0x58] sm:$0xff]
    %v181 = vld [vmem:[%s5 + $0x60] sm:$0xff]
    %v182 = vld [vmem:[%s5 + $0x68] sm:$0xff]
    %v183 = vld [vmem:[%s5 + $0x70] sm:$0xff]
    %v184 = vld [vmem:[%s5 + $0x78] sm:$0xff]
    %v185 = vld [vmem:[%s6] sm:$0x1]
    %v187 = vlaneseq
    %v188 = vshrl.u32 %v187, 7
    %v189 = vsub.s32 0, %v188
    %v190 = vrot.slane %v185, %v189
    %192 = vmatprep.subr.mxu0 0.0
    %193 = vmatpush1.msra.mxu0 %v169
    %194 = vmatprep.subr.mxu0 0.0
    %195 = vmatpush1.msra.mxu0 %v170
    %196 = vmatprep.subr.mxu0 0.0
    %197 = vmatpush1.msra.mxu0 %v171
    %198 = vmatprep.subr.mxu0 0.0
    %199 = vmatpush1.msra.mxu0 %v172
    %200 = vmatprep.subr.mxu0 0.0
    %201 = vmatpush1.msra.mxu0 %v173
    %202 = vmatprep.subr.mxu0 0.0
    %203 = vmatpush1.msra.mxu0 %v174
    %204 = vmatprep.subr.mxu0 0.0
    %205 = vmatpush1.msra.mxu0 %v175
    %206 = vmatprep.subr.mxu0 0.0
    %207 = vmatpush1.msra.mxu0 %v176
    %208 = vmatprep.subr.mxu0 0.0
    %209 = vmatpush1.msra.mxu0 %v177
    %210 = vmatprep.subr.mxu0 0.0
    %211 = vmatpush1.msra.mxu0 %v178
    %212 = vmatprep.subr.mxu0 0.0
    %213 = vmatpush1.msra.mxu0 %v179
    %214 = vmatprep.subr.mxu0 0.0
    %215 = vmatpush1.msra.mxu0 %v180
    %216 = vmatprep.subr.mxu0 0.0
    %217 = vmatpush1.msra.mxu0 %v181
    %218 = vmatprep.subr.mxu0 0.0
    %219 = vmatpush1.msra.mxu0 %v182
    %220 = vmatprep.subr.mxu0 0.0
    %221 = vmatpush1.msra.mxu0 %v183
    %222 = vmatprep.subr.mxu0 0.0
    %223 = vmatpush1.msra.mxu0 %v184
    %224 = vmatprep.subr.mxu0 0.0
    %225 = vmatpush1.msra.mxu0 0.0
    %226 = vmatprep.subr.mxu0 0.0
    %227 = vmatpush1.msra.mxu0 0.0
    %228 = vmatprep.subr.mxu0 0.0
    %229 = vmatpush1.msra.mxu0 0.0
    %230 = vmatprep.subr.mxu0 0.0
    %231 = vmatpush1.msra.mxu0 0.0
    %232 = vmatprep.subr.mxu0 0.0
    %233 = vmatpush1.msra.mxu0 0.0
    %234 = vmatprep.subr.mxu0 0.0
    %235 = vmatpush1.msra.mxu0 0.0
    %236 = vmatprep.subr.mxu0 0.0
    %237 = vmatpush1.msra.mxu0 0.0
    %238 = vmatprep.subr.mxu0 0.0
    %239 = vmatpush1.msra.mxu0 0.0
    %240 = vmatprep.subr.mxu0 0.0
    %241 = vmatpush1.msra.mxu0 0.0
    %242 = vmatprep.subr.mxu0 0.0
    %243 = vmatpush1.msra.mxu0 0.0
    %244 = vmatprep.subr.mxu0 0.0
    %245 = vmatpush1.msra.mxu0 0.0
    %246 = vmatprep.subr.mxu0 0.0
    %247 = vmatpush1.msra.mxu0 0.0
    %248 = vmatprep.subr.mxu0 0.0
    %249 = vmatpush1.msra.mxu0 0.0
    %250 = vmatprep.subr.mxu0 0.0
    %251 = vmatpush1.msra.mxu0 0.0
    %252 = vmatprep.subr.mxu0 0.0
    %253 = vmatpush1.msra.mxu0 0.0
    %254 = vmatprep.subr.mxu0 0.0
    %255 = vmatpush1.msra.mxu0 0.0
    %256 = vmatprep.mubr.f32.mxu0 0.0
    %257 = vmatmul.mubr.f32.gmra.mrb[0].mxu0 %v167
    %v258 = vpop.f32.mrb[0].mxu0
    %v259 = vadd.f32 %v190, %v258
    %v260 = vpop.f32.mrb[0].mxu0
    %261 = vmatprep.mubr.f32.mxu0 0.0
    %262 = vmatmul.mubr.f32.gmra.mrb[0].mxu0 %v168
    %v263 = vpop.f32.mrb[0].mxu0
    %v264 = vadd.f32 %v190, %v263
    %v265 = vpop.f32.mrb[0].mxu0
    %266 = vdwg.mxu0
    %267 = vst.msk [vmem:[#allocation2] sm:$0xff] %vm31, %v259
    %268 = vst.msk [vmem:[#allocation2 + $0x8] sm:$0xff] %vm31, %v264
    // Predicated region
    $region30: #{tpu_custom_call.1} parent=1 // pred_check
      _
    $region31: #{tpu_custom_call.1} parent=1 // pred_check_branch
      %270 = sbr.rel (0) target = $region33
    $region32: #{tpu_custom_call.1} parent=1 // pred_region
      %s272 = ssub.s32 256, 256
      %273 = vsyncadd [#allocation3], %s272
      %s274 = sshll.u32 [#allocation2], 4
      %s275 = int_to_ptr.vmem [resolvable:$true] %s274
      %280 = dma.vmem_to_hbm [thread:$0]  %s275, 256, %s7, [#allocation3], 128, 128, 8
    $region33: #{tpu_custom_call.1} parent=1 // pred_fallthru
      _
    // Predicated region
    $region34: #{tpu_custom_call.1} parent=1 // pred_check
      _
    $region35: #{tpu_custom_call.1} parent=1 // pred_check_branch
      %282 = sbr.rel (0) target = $region37
    $region36: #{tpu_custom_call.1} parent=1 // pred_region
      %283 = dma.done [#allocation3], 256
    $region37: #{tpu_custom_call.1} parent=1 // pred_fallthru
      _
    %284 = vsyncpa [#allocation3], 1

// kernel: tpu_custom_call.1
$region0: #{tpu_custom_call.1}
  #allocation0 [shape = 'u32[]', space=smem, size = 0x4, offset = 0x4, fixed_abs, tag = 'smem constant byte address 0x4 - core index']
  #allocation1 [shape = 'u32[144,128]{1,0:T(1,128)}', space=vmem, size = 0x12000, scoped, tag = 'internal scratch']
  %s0 = inlined_call_operand.vmem [shape: f32[16,32], index: 0, kind: input, shape index: {}]
  %s1 = inlined_call_operand.vmem [shape: f32[1,32], index: 1, kind: input, shape index: {}]
  %s2 = inlined_call_operand.vmem [shape: f32[1,32], index: 2, kind: input, shape index: {}]
  %s3 = inlined_call_operand.vmem [shape: f32[32,128], index: 3, kind: input, shape index: {}]
  %s4 = inlined_call_operand.vmem [shape: f32[1,128], index: 4, kind: input, shape index: {}]
  %s5 = inlined_call_operand.vmem [shape: f32[128,32], index: 5, kind: input, shape index: {}]
  %s6 = inlined_call_operand.vmem [shape: f32[1,32], index: 6, kind: input, shape index: {}]
  %s7 = inlined_call_operand.hbm [shape: f32[16,32], index: 7, kind: output, shape index: {}]
  %s8 = sld [smem:[#allocation0]]
  $region38: #{tpu_custom_call.1} parent=0
    _
  %s10 = ssub.s32 1, %s8
  %s11 = scalar_select 0, %s10, %s8
  $region1: #{tpu_custom_call.1} parent=0
    #allocation2 [shape = 'u8[8192]{0}', space=vmem, size = 0x2000, scoped, tag = 'output window, operand 0, single buffered']
    #allocation3 [shape = 's32[1]{0}', space=sflag, size = 0x4, scoped, tag = 'scoped memory for tpu_custom_call.1']
    %12 = vsyncpa [#allocation3], 0
    // Predicated region
    $region2: #{tpu_custom_call.1} parent=1 // pred_check
      _
    $region3: #{tpu_custom_call.1} parent=1 // pred_check_branch
      %14 = sbr.rel (0) target = $region5
    $region4: #{tpu_custom_call.1} parent=1 // pred_region
      _
    $region5: #{tpu_custom_call.1} parent=1 // pred_fallthru
      _
    // Predicated region
    $region6: #{tpu_custom_call.1} parent=1 // pred_check
      _
    $region7: #{tpu_custom_call.1} parent=1 // pred_check_branch
      %16 = sbr.rel (0) target = $region9
    $region8: #{tpu_custom_call.1} parent=1 // pred_region
      _
    $region9: #{tpu_custom_call.1} parent=1 // pred_fallthru
      _
    // Predicated region
    $region10: #{tpu_custom_call.1} parent=1 // pred_check
      _
    $region11: #{tpu_custom_call.1} parent=1 // pred_check_branch
      %18 = sbr.rel (0) target = $region13
    $region12: #{tpu_custom_call.1} parent=1 // pred_region
      _
    $region13: #{tpu_custom_call.1} parent=1 // pred_fallthru
      _
    // Predicated region
    $region14: #{tpu_custom_call.1} parent=1 // pred_check
      _
    $region15: #{tpu_custom_call.1} parent=1 // pred_check_branch
      %20 = sbr.rel (0) target = $region17
    $region16: #{tpu_custom_call.1} parent=1 // pred_region
      _
    $region17: #{tpu_custom_call.1} parent=1 // pred_fallthru
      _
    // Predicated region
    $region18: #{tpu_custom_call.1} parent=1 // pred_check
      _
    $region19: #{tpu_custom_call.1} parent=1 // pred_check_branch
      %22 = sbr.rel (0) target = $region21
    $region20: #{tpu_custom_call.1} parent=1 // pred_region
      _
    $region21: #{tpu_custom_call.1} parent=1 // pred_fallthru
      _
    // Predicated region
    $region22: #{tpu_custom_call.1} parent=1 // pred_check
      _
    $region23: #{tpu_custom_call.1} parent=1 // pred_check_branch
      %24 = sbr.rel (0) target = $region25
    $region24: #{tpu_custom_call.1} parent=1 // pred_region
      _
    $region25: #{tpu_custom_call.1} parent=1 // pred_fallthru
      _
    // Predicated region
    $region26: #{tpu_custom_call.1} parent=1 // pred_check
      _
    $region27: #{tpu_custom_call.1} parent=1 // pred_check_branch
      %26 = sbr.rel (0) target = $region29
    $region28: #{tpu_custom_call.1} parent=1 // pred_region
      _
    $region29: #{tpu_custom_call.1} parent=1 // pred_fallthru
      _
    %v27 = vld [vmem:[%s0] sm:$0xff]
    %v28 = vld [vmem:[%s0 + $0x8] sm:$0xff]
    %v29 = vld [vmem:[%s1] sm:$0x1]
    %v30 = vld [vmem:[%s2] sm:$0x1]
    %vm31 = vcmask 261120
    %v32 = vsel %vm31, %v27, 0.0
    %33 = vadd.xlane.f32.xlu0 %v32
    %v34 = vpop.xlane.xlu0 %33
    %v35 = vsel %vm31, %v28, 0.0
    %36 = vadd.xlane.f32.xlu0 %v35
    %v37 = vpop.xlane.xlu0 %36
    %v38 = vrcp.pop 32.0
    %v39 = vmul.f32 %v34, %v38
    %v40 = vmul.f32 %v37, %v38
    %v41 = vsub.f32 %v27, %v39
    %v42 = vsub.f32 %v28, %v40
    %v43 = vmul.f32 %v41, %v41
    %v44 = vmul.f32 %v42, %v42
    %v45 = vsel %vm31, %v43, 0.0
    %46 = vadd.xlane.f32.xlu0 %v45
    %v47 = vpop.xlane.xlu0 %46
    %v48 = vsel %vm31, %v44, 0.0
    %49 = vadd.xlane.f32.xlu0 %v48
    %v50 = vpop.xlane.xlu0 %49
    %v51 = vmul.f32 %v47, %v38
    %v52 = vmul.f32 %v50, %v38
    %v53 = vadd.f32 %v51, 1e-05
    %v54 = vadd.f32 %v52, 1e-05
    %v55 = vrsqrt.pop %v53
    %v56 = vrsqrt.pop %v54
    %v57 = vmul.f32 %v41, %v55
    %v58 = vmul.f32 %v42, %v56
    %v60 = vlaneseq
    %v61 = vshrl.u32 %v60, 7
    %v62 = vsub.s32 0, %v61
    %v63 = vrot.slane %v29, %v62
    %v65 = vmul.f32 %v57, %v63
    %v66 = vmul.f32 %v58, %v63
    %v68 = vlaneseq
    %v69 = vshrl.u32 %v68, 7
    %v70 = vsub.s32 0, %v69
    %v71 = vrot.slane %v30, %v70
    %v73 = vadd.f32 %v65, %v71
    %v74 = vadd.f32 %v66, %v71
    %v75 = vld [vmem:[%s3] sm:$0xff]
    %v76 = vld [vmem:[%s3 + $0x8] sm:$0xff]
    %v77 = vld [vmem:[%s3 + $0x10] sm:$0xff]
    %v78 = vld [vmem:[%s3 + $0x18] sm:$0xff]
    %v79 = vld [vmem:[%s4] sm:$0x1]
    %v81 = vlaneseq
    %v82 = vshrl.u32 %v81, 7
    %v83 = vsub.s32 0, %v82
    %v84 = vrot.slane %v79, %v83
    %v87 = vsel %vm31, %v73, 0
    %v90 = vsel %vm31, %v74, 0
    %92 = vmatprep.subr.mxu0 0.0
    %93 = vmatpush1.msra.mxu0 %v75
    %94 = vmatprep.subr.mxu0 0.0
    %95 = vmatpush1.msra.mxu0 %v76
    %96 = vmatprep.subr.mxu0 0.0
    %97 = vmatpush1.msra.mxu0 %v77
    %98 = vmatprep.subr.mxu0 0.0
    %99 = vmatpush1.msra.mxu0 %v78
    %100 = vmatprep.subr.mxu0 0.0
    %101 = vmatpush1.msra.mxu0 0.0
    %102 = vmatprep.subr.mxu0 0.0
    %103 = vmatpush1.msra.mxu0 0.0
    %104 = vmatprep.subr.mxu0 0.0
    %105 = vmatpush1.msra.mxu0 0.0
    %106 = vmatprep.subr.mxu0 0.0
    %107 = vmatpush1.msra.mxu0 0.0
    %108 = vmatprep.subr.mxu0 0.0
    %109 = vmatpush1.msra.mxu0 0.0
    %110 = vmatprep.subr.mxu0 0.0
    %111 = vmatpush1.msra.mxu0 0.0
    %112 = vmatprep.subr.mxu0 0.0
    %113 = vmatpush1.msra.mxu0 0.0
    %114 = vmatprep.subr.mxu0 0.0
    %115 = vmatpush1.msra.mxu0 0.0
    %116 = vmatprep.subr.mxu0 0.0
    %117 = vmatpush1.msra.mxu0 0.0
    %118 = vmatprep.subr.mxu0 0.0
    %119 = vmatpush1.msra.mxu0 0.0
    %120 = vmatprep.subr.mxu0 0.0
    %121 = vmatpush1.msra.mxu0 0.0
    %122 = vmatprep.subr.mxu0 0.0
    %123 = vmatpush1.msra.mxu0 0.0
    %124 = vmatprep.subr.mxu0 0.0
    %125 = vmatpush1.msra.mxu0 0.0
    %126 = vmatprep.subr.mxu0 0.0
    %127 = vmatpush1.msra.mxu0 0.0
    %128 = vmatprep.subr.mxu0 0.0
    %129 = vmatpush1.msra.mxu0 0.0
    %130 = vmatprep.subr.mxu0 0.0
    %131 = vmatpush1.msra.mxu0 0.0
    %132 = vmatprep.subr.mxu0 0.0
    %133 = vmatpush1.msra.mxu0 0.0
    %134 = vmatprep.subr.mxu0 0.0
    %135 = vmatpush1.msra.mxu0 0.0
    %136 = vmatprep.subr.mxu0 0.0
    %137 = vmatpush1.msra.mxu0 0.0
    %138 = vmatprep.subr.mxu0 0.0
    %139 = vmatpush1.msra.mxu0 0.0
    %140 = vmatprep.subr.mxu0 0.0
    %141 = vmatpush1.msra.mxu0 0.0
    %142 = vmatprep.subr.mxu0 0.0
    %143 = vmatpush1.msra.mxu0 0.0
    %144 = vmatprep.subr.mxu0 0.0
    %145 = vmatpush1.msra.mxu0 0.0
    %146 = vmatprep.subr.mxu0 0.0
    %147 = vmatpush1.msra.mxu0 0.0
    %148 = vmatprep.subr.mxu0 0.0
    %149 = vmatpush1.msra.mxu0 0.0
    %150 = vmatprep.subr.mxu0 0.0
    %151 = vmatpush1.msra.mxu0 0.0
    %152 = vmatprep.subr.mxu0 0.0
    %153 = vmatpush1.msra.mxu0 0.0
    %154 = vmatprep.subr.mxu0 0.0
    %155 = vmatpush1.msra.mxu0 0.0
    %156 = vmatprep.mubr.f32.mxu0 0.0
    %157 = vmatmul.mubr.f32.gmra.mrb[0].mxu0 %v87
    %v158 = vpop.f32.mrb[0].mxu0
    %v159 = vadd.f32 %v84, %v158
    %v160 = vpop.f32.mrb[0].mxu0
    %161 = vmatprep.mubr.f32.mxu0 0.0
    %162 = vmatmul.mubr.f32.gmra.mrb[0].mxu0 %v90
    %v163 = vpop.f32.mrb[0].mxu0
    %v164 = vadd.f32 %v84, %v163
    %v165 = vpop.f32.mrb[0].mxu0
    %166 = vdwg.mxu0
    %v167 = vmax.f32 %v159, 0.0
    %v168 = vmax.f32 %v164, 0.0
    %v169 = vld [vmem:[%s5] sm:$0xff]
    %v170 = vld [vmem:[%s5 + $0x8] sm:$0xff]
    %v171 = vld [vmem:[%s5 + $0x10] sm:$0xff]
    %v172 = vld [vmem:[%s5 + $0x18] sm:$0xff]
    %v173 = vld [vmem:[%s5 + $0x20] sm:$0xff]
    %v174 = vld [vmem:[%s5 + $0x28] sm:$0xff]
    %v175 = vld [vmem:[%s5 + $0x30] sm:$0xff]
    %v176 = vld [vmem:[%s5 + $0x38] sm:$0xff]
    %v177 = vld [vmem:[%s5 + $0x40] sm:$0xff]
    %v178 = vld [vmem:[%s5 + $0x48] sm:$0xff]
    %v179 = vld [vmem:[%s5 + $0x50] sm:$0xff]
    %v180 = vld [vmem:[%s5 + $0x58] sm:$0xff]
    %v181 = vld [vmem:[%s5 + $0x60] sm:$0xff]
    %v182 = vld [vmem:[%s5 + $0x68] sm:$0xff]
    %v183 = vld [vmem:[%s5 + $0x70] sm:$0xff]
    %v184 = vld [vmem:[%s5 + $0x78] sm:$0xff]
    %v185 = vld [vmem:[%s6] sm:$0x1]
    %v187 = vlaneseq
    %v188 = vshrl.u32 %v187, 7
    %v189 = vsub.s32 0, %v188
    %v190 = vrot.slane %v185, %v189
    %192 = vmatprep.subr.mxu0 0.0
    %193 = vmatpush1.msra.mxu0 %v169
    %194 = vmatprep.subr.mxu0 0.0
    %195 = vmatpush1.msra.mxu0 %v170
    %196 = vmatprep.subr.mxu0 0.0
    %197 = vmatpush1.msra.mxu0 %v171
    %198 = vmatprep.subr.mxu0 0.0
    %199 = vmatpush1.msra.mxu0 %v172
    %200 = vmatprep.subr.mxu0 0.0
    %201 = vmatpush1.msra.mxu0 %v173
    %202 = vmatprep.subr.mxu0 0.0
    %203 = vmatpush1.msra.mxu0 %v174
    %204 = vmatprep.subr.mxu0 0.0
    %205 = vmatpush1.msra.mxu0 %v175
    %206 = vmatprep.subr.mxu0 0.0
    %207 = vmatpush1.msra.mxu0 %v176
    %208 = vmatprep.subr.mxu0 0.0
    %209 = vmatpush1.msra.mxu0 %v177
    %210 = vmatprep.subr.mxu0 0.0
    %211 = vmatpush1.msra.mxu0 %v178
    %212 = vmatprep.subr.mxu0 0.0
    %213 = vmatpush1.msra.mxu0 %v179
    %214 = vmatprep.subr.mxu0 0.0
    %215 = vmatpush1.msra.mxu0 %v180
    %216 = vmatprep.subr.mxu0 0.0
    %217 = vmatpush1.msra.mxu0 %v181
    %218 = vmatprep.subr.mxu0 0.0
    %219 = vmatpush1.msra.mxu0 %v182
    %220 = vmatprep.subr.mxu0 0.0
    %221 = vmatpush1.msra.mxu0 %v183
    %222 = vmatprep.subr.mxu0 0.0
    %223 = vmatpush1.msra.mxu0 %v184
    %224 = vmatprep.subr.mxu0 0.0
    %225 = vmatpush1.msra.mxu0 0.0
    %226 = vmatprep.subr.mxu0 0.0
    %227 = vmatpush1.msra.mxu0 0.0
    %228 = vmatprep.subr.mxu0 0.0
    %229 = vmatpush1.msra.mxu0 0.0
    %230 = vmatprep.subr.mxu0 0.0
    %231 = vmatpush1.msra.mxu0 0.0
    %232 = vmatprep.subr.mxu0 0.0
    %233 = vmatpush1.msra.mxu0 0.0
    %234 = vmatprep.subr.mxu0 0.0
    %235 = vmatpush1.msra.mxu0 0.0
    %236 = vmatprep.subr.mxu0 0.0
    %237 = vmatpush1.msra.mxu0 0.0
    %238 = vmatprep.subr.mxu0 0.0
    %239 = vmatpush1.msra.mxu0 0.0
    %240 = vmatprep.subr.mxu0 0.0
    %241 = vmatpush1.msra.mxu0 0.0
    %242 = vmatprep.subr.mxu0 0.0
    %243 = vmatpush1.msra.mxu0 0.0
    %244 = vmatprep.subr.mxu0 0.0
    %245 = vmatpush1.msra.mxu0 0.0
    %246 = vmatprep.subr.mxu0 0.0
    %247 = vmatpush1.msra.mxu0 0.0
    %248 = vmatprep.subr.mxu0 0.0
    %249 = vmatpush1.msra.mxu0 0.0
    %250 = vmatprep.subr.mxu0 0.0
    %251 = vmatpush1.msra.mxu0 0.0
    %252 = vmatprep.subr.mxu0 0.0
    %253 = vmatpush1.msra.mxu0 0.0
    %254 = vmatprep.subr.mxu0 0.0
    %255 = vmatpush1.msra.mxu0 0.0
    %256 = vmatprep.mubr.f32.mxu0 0.0
    %257 = vmatmul.mubr.f32.gmra.mrb[0].mxu0 %v167
    %v258 = vpop.f32.mrb[0].mxu0
    %v259 = vadd.f32 %v190, %v258
    %v260 = vpop.f32.mrb[0].mxu0
    %261 = vmatprep.mubr.f32.mxu0 0.0
    %262 = vmatmul.mubr.f32.gmra.mrb[0].mxu0 %v168
    %v263 = vpop.f32.mrb[0].mxu0
    %v264 = vadd.f32 %v190, %v263
    %v265 = vpop.f32.mrb[0].mxu0
    %266 = vdwg.mxu0
    %267 = vst.msk [vmem:[#allocation2] sm:$0xff] %vm31, %v259
    %268 = vst.msk [vmem:[#allocation2 + $0x8] sm:$0xff] %vm31, %v264
    // Predicated region
    $region30: #{tpu_custom_call.1} parent=1 // pred_check
      _
    $region31: #{tpu_custom_call.1} parent=1 // pred_check_branch
      %270 = sbr.rel (0) target = $region33
    $region32: #{tpu_custom_call.1} parent=1 // pred_region
      %s272 = ssub.s32 256, 256
      %273 = vsyncadd [#allocation3], %s272
      %s274 = sshll.u32 [#allocation2], 4
      %s275 = int_to_ptr.vmem [resolvable:$true] %s274
      %280 = dma.vmem_to_hbm [thread:$0]  %s275, 256, %s7, [#allocation3], 128, 128, 8
    $region33: #{tpu_custom_call.1} parent=1 // pred_fallthru
      _
    // Predicated region
    $region34: #{tpu_custom_call.1} parent=1 // pred_check
      _
    $region35: #{tpu_custom_call.1} parent=1 // pred_check_branch
      %282 = sbr.rel (0) target = $region37
    $region36: #{tpu_custom_call.1} parent=1 // pred_region
      %283 = dma.done [#allocation3], 256
    $region37: #{tpu_custom_call.1} parent=1 // pred_fallthru
      _
    %284 = vsyncpa [#allocation3], 1

</llo_original>
